<compile_context>
chip_gen: v6e
topology: v6e:2x2x1
jax: 0.10.0
libtpu: 0.0.40
codegen_flags: <defaults>
</compile_context>

<pallas_src>
import functools

import jax
import jax.numpy as jnp
from jax import lax
from jax.experimental import pallas as pl
from jax.experimental.pallas import tpu as pltpu

NEG_SLOPE = 0.1  # supar MLP uses LeakyReLU(negative_slope=0.1)
_HIGHEST = lax.Precision.HIGHEST


def _leaky_relu(v):
    # max-based form: one mul + one max on the VPU (no cmp/select).
    return jnp.maximum(v, NEG_SLOPE * v)


def _detect_buffered():
    """Feature-detect BlockSpec(pipeline_mode=pl.Buffered(1)) support."""
    try:
        pl.BlockSpec((8, 128), lambda i: (i, 0), pipeline_mode=pl.Buffered(1))
        return True
    except Exception:
        return False


_HAS_BUFFERED = _detect_buffered()


def span2o_kernel(px_ref, bx_ref, rT_ref, row_ref, o_ref, *, ti):
    """One (batch b, span-start tile it) grid step.

    px_ref  : (1, L, m)    f32   x_span @ Wx^T (no bias), full sequence
    bx_ref  : (1, m)       f32   head-MLP bias (folded onto the j side only)
    rT_ref  : (1, m, L-1)  bf16  ((q @ Wm^T + wycol) * inv_scale)^T, trimmed
    row_ref : (1, 1, L-1)  f32   (q @ wxrow + corner) * inv_scale, trimmed
    o_ref   : (1, ti*L, L-1)     biaffine span scores for this i tile
    """
    px = px_ref[0]                                    # (L, m)
    L, m = px.shape
    it = pl.program_id(1)
    start = pl.multiple_of(it * ti, ti)
    pxi = px_ref[0, pl.ds(start, ti), :]              # (ti, m) i-tile (no bias)
    pxj = px + bx_ref[...]                            # (L, m)  bias on j side
    diff = pxj[None, :, :] - pxi[:, None, :]          # (ti, L, m)
    # LeakyReLU then immediate bf16 cast: single live copy of the dot operand.
    p = _leaky_relu(diff).astype(jnp.bfloat16).reshape(ti * L, m)
    # Dominant matmul: plain NN (ti*L, m) @ (m, L-1), f32 accumulation on MXU.
    s = jnp.dot(p, rT_ref[0], preferred_element_type=jnp.float32)
    o_ref[0] = (s + row_ref[0]).astype(o_ref.dtype)


def _vmem_budget_and_limit():
    """Generation-aware (per-step VMEM budget, scoped vmem limit) in bytes."""
    try:
        cap = int(pltpu.get_tpu_info().vmem_capacity_bytes)
    except Exception:
        cap = 64 << 20                       # conservative (v7x-sized) fallback
    if cap >= (100 << 20):                   # v5e / v6e: 128 MiB per TensorCore
        return 36 << 20, 96 << 20
    return 12 << 20, 48 << 20                # v7x: 64 MiB per TensorCore


def _choose_ti(L, m, *, batch, budget_bytes):
    """Largest span-start tile TI (divisor of L, multiple of 8 or == L) in budget."""
    cands = [t for t in range(8, L, 8) if L % t == 0] + [L]
    # Grid-invariant residents (px, r_aug^T, row, bx), conservatively x2 buffers.
    invariant = 2 * (4 * L * m + 2 * m * L + 4 * L + 4 * m)
    avail = max(budget_bytes - invariant, 1)
    per = lambda t: t * L * (6 * m + 12 * L)  # diff f32 + p bf16 + s + 2x out blk
    fitting = [t for t in cands if per(t) <= avail] or [min(cands)]
    ti = max(fitting)
    # Keep the grid >= 2 even for B == 1 so both v7x TensorCores have work.
    if batch == 1 and ti == L:
        smaller = [t for t in fitting if t < L]
        if smaller:
            ti = max(smaller)
    return ti


def span2o_scorer(x, x_span, params, *, n_in, scale, out_dtype=jnp.float32):
    B, L, D = x.shape
    m = params["wx"].shape[0]
    inv_scale = 1.0 / (float(n_in) ** scale)
    Lm1 = L - 1

    wx, bx = params["wx"], params["bx"].reshape(1, m)
    wy, by = params["wy"], params["by"].reshape(1, m)
    w = params["w"]                                   # (m+1, m+1)
    w_main, w_xrow, w_ycol, corner = w[:m, :m], w[m, :m], w[:m, m], w[m, m]

    # ---- i-tile-invariant projections, hoisted out of the kernel (tiny XLA ops)
    px = jnp.einsum("bld,md->blm", x_span, wx, precision=_HIGHEST)          # (B,L,m)
    q = _leaky_relu(jnp.einsum("bld,md->blm", x, wy, precision=_HIGHEST) + by)
    r_aug = (jnp.einsum("blj,ij->bli", q, w_main, precision=_HIGHEST)
             + w_ycol) * inv_scale                                          # (B,L,m)
    rT = jnp.swapaxes(r_aug, 1, 2)[:, :, :Lm1].astype(jnp.bfloat16)         # (B,m,L-1)
    row = ((jnp.einsum("blj,j->bl", q, w_xrow, precision=_HIGHEST) + corner)
           * inv_scale)[:, None, :Lm1].astype(jnp.float32)                  # (B,1,L-1)

    budget, vmem_limit = _vmem_budget_and_limit()
    TI = _choose_ti(L, m, batch=B, budget_bytes=budget)
    n_i = L // TI

    kernel = functools.partial(span2o_kernel, ti=TI)
    flops = 2 * B * L * L * Lm1 * m
    bytes_accessed = (B * L * L * Lm1 * jnp.dtype(out_dtype).itemsize
                      + 4 * B * L * m + 2 * B * m * Lm1 + 4 * B * Lm1 + 4 * m)

    def make_spec(shape, index_map, *, buffered):
        if buffered:
            return pl.BlockSpec(shape, index_map, pipeline_mode=pl.Buffered(1))
        return pl.BlockSpec(shape, index_map)

    def call(buffered):
        in_specs = [
            make_spec((1, L, m), lambda b, it: (b, 0, 0), buffered=buffered),    # px
            make_spec((1, m), lambda b, it: (0, 0), buffered=buffered),          # bx
            make_spec((1, m, Lm1), lambda b, it: (b, 0, 0), buffered=buffered),  # r_aug^T
            make_spec((1, 1, Lm1), lambda b, it: (b, 0, 0), buffered=buffered),  # row
        ]
        return pl.pallas_call(
            kernel,
            out_shape=jax.ShapeDtypeStruct((B, L * L, Lm1), out_dtype),
            grid=(B, n_i),
            in_specs=in_specs,
            out_specs=pl.BlockSpec((1, TI * L, Lm1), lambda b, it: (b, it, 0)),
            compiler_params=pltpu.CompilerParams(
                dimension_semantics=("parallel", "parallel"),
                vmem_limit_bytes=vmem_limit),
            cost_estimate=pl.CostEstimate(flops=flops, transcendentals=0,
                                          bytes_accessed=bytes_accessed),
        )(px, bx, rT, row)

    if _HAS_BUFFERED:
        try:
            out = call(True)
        except Exception:
            out = call(False)
    else:
        out = call(False)

    # Free relabel (contiguous): (B, L*L, L-1) -> (B, L, L, L-1). No extra pass.
    return out.reshape(B, L, L, Lm1)


def span2o_reference(x, x_span, params, *, n_in, scale):
    """Pure-JAX mirror of the PyTorch forward (for correctness check)."""
    wx, bx, wy, by, w = (params["wx"], params["bx"], params["wy"],
                         params["by"], params["w"])
    B, L, D = x_span.shape
    span = x_span[:, None, :, :] - x_span[:, :, None, :]                    # (B,L,L,D)
    span2 = span.reshape(B, L * L, D)
    pv = jnp.einsum("bnd,md->bnm", span2, wx, precision=_HIGHEST) + bx
    p = jnp.where(pv > 0, pv, NEG_SLOPE * pv)                               # (B,L*L,m)
    qv = jnp.einsum("bld,md->blm", x, wy, precision=_HIGHEST) + by
    q = jnp.where(qv > 0, qv, NEG_SLOPE * qv)                               # (B,L,m)
    p1 = jnp.concatenate([p, jnp.ones_like(p[..., :1])], -1)
    q1 = jnp.concatenate([q, jnp.ones_like(q[..., :1])], -1)
    s = jnp.einsum("bxi,ij,byj->bxy", p1, w, q1, precision=_HIGHEST) / (n_in ** scale)
    return s.reshape(B, L, L, L).astype(jnp.float32)[..., : L - 1]


if __name__ == "__main__":
    B, L, D, M = 2, 8, 32, 32      # batch, seq_len, n_in, n_mlp
    SCALE = 1                      # biaffine scale exponent
    key = jax.random.PRNGKey(0)
    kx, ks, k1, k2, k3, k4, k5 = jax.random.split(key, 7)

    x = jax.random.normal(kx, (B, L, D), jnp.float32)
    x_span = jax.random.normal(ks, (B, L, D), jnp.float32)

    params = {
        "wx": 0.1 * jax.random.normal(k1, (M, D), jnp.float32),
        "bx": 0.1 * jax.random.normal(k2, (M,), jnp.float32),
        "wy": 0.1 * jax.random.normal(k3, (M, D), jnp.float32),
        "by": 0.1 * jax.random.normal(k4, (M,), jnp.float32),
        "w":  0.1 * jax.random.normal(k5, (M + 1, M + 1), jnp.float32),  # n_out=1 squeezed
    }

    out = span2o_scorer(x, x_span, params, n_in=D, scale=SCALE)
    out = jax.block_until_ready(out)

    ref = span2o_reference(x, x_span, params, n_in=D, scale=SCALE)
    assert out.shape == (B, L, L, L - 1) and out.dtype == jnp.float32
    # bf16 operands on the dominant matmul (f32 accumulation) -> relaxed tolerance.
    assert jnp.allclose(out, ref, atol=5e-3, rtol=2e-2), "mismatch vs reference"
    print("KERNEL_OK")
</pallas_src>

<mosaic_0001>
module attributes {stable_mosaic.version = 11 : i64} {
  func.func @span2o_kernel(%arg0: i32, %arg1: i32, %arg2: memref<1x8x32xf32, #tpu.memory_space<vmem>>, %arg3: memref<1x32xf32, #tpu.memory_space<vmem>>, %arg4: memref<1x32x7xbf16, #tpu.memory_space<vmem>>, %arg5: memref<1x1x7xf32, #tpu.memory_space<vmem>>, %arg6: memref<1x64x7xf32, #tpu.memory_space<vmem>>) attributes {dimension_semantics = [#tpu.dimension_semantics<parallel>, #tpu.dimension_semantics<parallel>], iteration_bounds = array<i64: 2, 1>, scalar_prefetch = 0 : i64, scratch_operands = 0 : i64, tpu.core_type = #tpu.core_type<tc>, window_params = [{pipeline_mode = #tpu.pipeline_mode<synchronous>, transform_indices = @transform_0, window_bounds = array<i64: 1, 8, 32>}, {pipeline_mode = #tpu.pipeline_mode<synchronous>, transform_indices = @transform_1, window_bounds = array<i64: 1, 32>}, {pipeline_mode = #tpu.pipeline_mode<synchronous>, transform_indices = @transform_2, window_bounds = array<i64: 1, 32, 7>}, {pipeline_mode = #tpu.pipeline_mode<synchronous>, transform_indices = @transform_3, window_bounds = array<i64: 1, 1, 7>}, {transform_indices = @transform_4, window_bounds = array<i64: 1, 64, 7>}]} {
    %c0 = arith.constant 0 : index
    %c0_0 = arith.constant 0 : index
    %c0_1 = arith.constant 0 : index
    %0 = vector.load %arg2[%c0, %c0_0, %c0_1] : memref<1x8x32xf32, #tpu.memory_space<vmem>>, vector<1x8x32xf32>
    %1 = vector.shape_cast %0 : vector<1x8x32xf32> to vector<8x32xf32>
    %c8_i32 = arith.constant 8 : i32
    %2 = arith.muli %arg1, %c8_i32 : i32
    %3 = tpu.assume_multiple %2, 8 : i32
    %c0_2 = arith.constant 0 : index
    %4 = arith.index_cast %3 : i32 to index
    %c0_3 = arith.constant 0 : index
    %5 = vector.load %arg2[%c0_2, %4, %c0_3] : memref<1x8x32xf32, #tpu.memory_space<vmem>>, vector<1x8x32xf32>
    %6 = vector.shape_cast %5 : vector<1x8x32xf32> to vector<8x32xf32>
    %c0_4 = arith.constant 0 : index
    %c0_5 = arith.constant 0 : index
    %7 = vector.load %arg3[%c0_4, %c0_5] : memref<1x32xf32, #tpu.memory_space<vmem>>, vector<1x32xf32>
    %8 = vector.broadcast %7 : vector<1x32xf32> to vector<8x32xf32>
    %9 = arith.addf %1, %8 : vector<8x32xf32>
    %10 = vector.shape_cast %9 : vector<8x32xf32> to vector<1x8x32xf32>
    %11 = vector.shape_cast %6 : vector<8x32xf32> to vector<8x1x32xf32>
    %12 = vector.broadcast %10 : vector<1x8x32xf32> to vector<8x8x32xf32>
    %13 = vector.broadcast %11 : vector<8x1x32xf32> to vector<8x8x32xf32>
    %14 = arith.subf %12, %13 : vector<8x8x32xf32>
    %cst = arith.constant 1.000000e-01 : f32
    %15 = vector.broadcast %cst : f32 to vector<8x8x32xf32>
    %16 = arith.mulf %15, %14 : vector<8x8x32xf32>
    %17 = arith.maximumf %14, %16 : vector<8x8x32xf32>
    %18 = arith.truncf %17 : vector<8x8x32xf32> to vector<8x8x32xbf16>
    %19 = vector.shape_cast %18 : vector<8x8x32xbf16> to vector<64x32xbf16>
    %c0_6 = arith.constant 0 : index
    %c0_7 = arith.constant 0 : index
    %c0_8 = arith.constant 0 : index
    %20 = vector.load %arg4[%c0_6, %c0_7, %c0_8] : memref<1x32x7xbf16, #tpu.memory_space<vmem>>, vector<1x32x7xbf16>
    %21 = vector.shape_cast %20 : vector<1x32x7xbf16> to vector<32x7xbf16>
    %cst_9 = arith.constant dense<0.000000e+00> : vector<64x7xf32>
    %22 = tpu.matmul %19, %21, %cst_9 {dimension_numbers = #tpu.dot_dimension_numbers<[1], [0], [0], [1], [0, 0, 1, 1], [], []>} : vector<64x32xbf16>, vector<32x7xbf16>, vector<64x7xf32> -> vector<64x7xf32>
    %c0_10 = arith.constant 0 : index
    %c0_11 = arith.constant 0 : index
    %c0_12 = arith.constant 0 : index
    %23 = vector.load %arg5[%c0_10, %c0_11, %c0_12] : memref<1x1x7xf32, #tpu.memory_space<vmem>>, vector<1x1x7xf32>
    %24 = vector.shape_cast %23 : vector<1x1x7xf32> to vector<1x7xf32>
    %25 = vector.broadcast %24 : vector<1x7xf32> to vector<64x7xf32>
    %26 = arith.addf %22, %25 : vector<64x7xf32>
    %c0_13 = arith.constant 0 : index
    %c0_14 = arith.constant 0 : index
    %c0_15 = arith.constant 0 : index
    %27 = vector.load %arg6[%c0_13, %c0_14, %c0_15] : memref<1x64x7xf32, #tpu.memory_space<vmem>>, vector<1x64x7xf32>
    %28 = vector.shape_cast %27 : vector<1x64x7xf32> to vector<64x7xf32>
    %29 = vector.shape_cast %26 : vector<64x7xf32> to vector<1x64x7xf32>
    tpu.vector_store %arg6[%c0_13, %c0_14, %c0_15], %29 {strides = array<i32>} : memref<1x64x7xf32, #tpu.memory_space<vmem>>, vector<1x64x7xf32>,
    return
  }
  func.func @transform_0(%arg0: i32, %arg1: i32) -> (i32, i32, i32) {
    %c0_i32 = arith.constant 0 : i32
    %c0_i32_0 = arith.constant 0 : i32
    %c0_i32_1 = arith.constant 0 : i32
    return %arg0, %c0_i32, %c0_i32_0 : i32, i32, i32
  }
  func.func @transform_1(%arg0: i32, %arg1: i32) -> (i32, i32) {
    %c0_i32 = arith.constant 0 : i32
    %c0_i32_0 = arith.constant 0 : i32
    %c0_i32_1 = arith.constant 0 : i32
    return %c0_i32, %c0_i32_0 : i32, i32
  }
  func.func @transform_2(%arg0: i32, %arg1: i32) -> (i32, i32, i32) {
    %c0_i32 = arith.constant 0 : i32
    %c0_i32_0 = arith.constant 0 : i32
    %c0_i32_1 = arith.constant 0 : i32
    return %arg0, %c0_i32, %c0_i32_0 : i32, i32, i32
  }
  func.func @transform_3(%arg0: i32, %arg1: i32) -> (i32, i32, i32) {
    %c0_i32 = arith.constant 0 : i32
    %c0_i32_0 = arith.constant 0 : i32
    %c0_i32_1 = arith.constant 0 : i32
    return %arg0, %c0_i32, %c0_i32_0 : i32, i32, i32
  }
  func.func @transform_4(%arg0: i32, %arg1: i32) -> (i32, i32, i32) {
    %c0_i32 = arith.constant 0 : i32
    %c0_i32_0 = arith.constant 0 : i32
    return %arg0, %arg1, %c0_i32 : i32, i32, i32
  }
}

module attributes {stable_mosaic.version = 11 : i64} {
  func.func @span2o_kernel(%arg0: i32, %arg1: i32, %arg2: memref<1x8x32xf32, #tpu.memory_space<vmem>>, %arg3: memref<1x32xf32, #tpu.memory_space<vmem>>, %arg4: memref<1x32x7xbf16, #tpu.memory_space<vmem>>, %arg5: memref<1x1x7xf32, #tpu.memory_space<vmem>>, %arg6: memref<1x64x7xf32, #tpu.memory_space<vmem>>) attributes {dimension_semantics = [#tpu.dimension_semantics<parallel>, #tpu.dimension_semantics<parallel>], iteration_bounds = array<i64: 2, 1>, scalar_prefetch = 0 : i64, scratch_operands = 0 : i64, tpu.core_type = #tpu.core_type<tc>, window_params = [{transform_indices = @transform_0, window_bounds = array<i64: 1, 8, 32>}, {pipeline_mode = #tpu.pipeline_mode<synchronous>, transform_indices = @transform_1, window_bounds = array<i64: 1, 32>}, {transform_indices = @transform_2, window_bounds = array<i64: 1, 32, 7>}, {transform_indices = @transform_3, window_bounds = array<i64: 1, 1, 7>}, {transform_indices = @transform_4, window_bounds = array<i64: 1, 64, 7>}]} {
    %c0 = arith.constant 0 : index
    %c0_0 = arith.constant 0 : index
    %c0_1 = arith.constant 0 : index
    %0 = vector.load %arg2[%c0, %c0_0, %c0_1] : memref<1x8x32xf32, #tpu.memory_space<vmem>>, vector<1x8x32xf32>
    %1 = vector.shape_cast %0 : vector<1x8x32xf32> to vector<8x32xf32>
    %c8_i32 = arith.constant 8 : i32
    %2 = arith.muli %arg1, %c8_i32 : i32
    %3 = tpu.assume_multiple %2, 8 : i32
    %c0_2 = arith.constant 0 : index
    %4 = arith.index_cast %3 : i32 to index
    %c0_3 = arith.constant 0 : index
    %5 = vector.load %arg2[%c0_2, %4, %c0_3] : memref<1x8x32xf32, #tpu.memory_space<vmem>>, vector<1x8x32xf32>
    %6 = vector.shape_cast %5 : vector<1x8x32xf32> to vector<8x32xf32>
    %c0_4 = arith.constant 0 : index
    %c0_5 = arith.constant 0 : index
    %7 = vector.load %arg3[%c0_4, %c0_5] : memref<1x32xf32, #tpu.memory_space<vmem>>, vector<1x32xf32>
    %8 = vector.broadcast %7 : vector<1x32xf32> to vector<8x32xf32>
    %9 = arith.addf %1, %8 : vector<8x32xf32>
    %10 = vector.shape_cast %9 : vector<8x32xf32> to vector<1x8x32xf32>
    %11 = vector.shape_cast %6 : vector<8x32xf32> to vector<8x1x32xf32>
    %12 = vector.broadcast %10 : vector<1x8x32xf32> to vector<8x8x32xf32>
    %13 = vector.broadcast %11 : vector<8x1x32xf32> to vector<8x8x32xf32>
    %14 = arith.subf %12, %13 : vector<8x8x32xf32>
    %cst = arith.constant 1.000000e-01 : f32
    %15 = vector.broadcast %cst : f32 to vector<8x8x32xf32>
    %16 = arith.mulf %15, %14 : vector<8x8x32xf32>
    %17 = arith.maximumf %14, %16 : vector<8x8x32xf32>
    %18 = arith.truncf %17 : vector<8x8x32xf32> to vector<8x8x32xbf16>
    %19 = vector.shape_cast %18 : vector<8x8x32xbf16> to vector<64x32xbf16>
    %c0_6 = arith.constant 0 : index
    %c0_7 = arith.constant 0 : index
    %c0_8 = arith.constant 0 : index
    %20 = vector.load %arg4[%c0_6, %c0_7, %c0_8] : memref<1x32x7xbf16, #tpu.memory_space<vmem>>, vector<1x32x7xbf16>
    %21 = vector.shape_cast %20 : vector<1x32x7xbf16> to vector<32x7xbf16>
    %cst_9 = arith.constant dense<0.000000e+00> : vector<64x7xf32>
    %22 = tpu.matmul %19, %21, %cst_9 {dimension_numbers = #tpu.dot_dimension_numbers<[1], [0], [0], [1], [0, 0, 1, 1], [], []>} : vector<64x32xbf16>, vector<32x7xbf16>, vector<64x7xf32> -> vector<64x7xf32>
    %c0_10 = arith.constant 0 : index
    %c0_11 = arith.constant 0 : index
    %c0_12 = arith.constant 0 : index
    %23 = vector.load %arg5[%c0_10, %c0_11, %c0_12] : memref<1x1x7xf32, #tpu.memory_space<vmem>>, vector<1x1x7xf32>
    %24 = vector.shape_cast %23 : vector<1x1x7xf32> to vector<1x7xf32>
    %25 = vector.broadcast %24 : vector<1x7xf32> to vector<64x7xf32>
    %26 = arith.addf %22, %25 : vector<64x7xf32>
    %c0_13 = arith.constant 0 : index
    %c0_14 = arith.constant 0 : index
    %c0_15 = arith.constant 0 : index
    %27 = vector.load %arg6[%c0_13, %c0_14, %c0_15] : memref<1x64x7xf32, #tpu.memory_space<vmem>>, vector<1x64x7xf32>
    %28 = vector.shape_cast %27 : vector<1x64x7xf32> to vector<64x7xf32>
    %29 = vector.shape_cast %26 : vector<64x7xf32> to vector<1x64x7xf32>
    tpu.vector_store %arg6[%c0_13, %c0_14, %c0_15], %29 {strides = array<i32>} : memref<1x64x7xf32, #tpu.memory_space<vmem>>, vector<1x64x7xf32>,
    return
  }
  func.func @transform_0(%arg0: i32, %arg1: i32) -> (i32, i32, i32) {
    %c0_i32 = arith.constant 0 : i32
    %c0_i32_0 = arith.constant 0 : i32
    %c0_i32_1 = arith.constant 0 : i32
    return %arg0, %c0_i32, %c0_i32_0 : i32, i32, i32
  }
  func.func @transform_1(%arg0: i32, %arg1: i32) -> (i32, i32) {
    %c0_i32 = arith.constant 0 : i32
    %c0_i32_0 = arith.constant 0 : i32
    %c0_i32_1 = arith.constant 0 : i32
    return %c0_i32, %c0_i32_0 : i32, i32
  }
  func.func @transform_2(%arg0: i32, %arg1: i32) -> (i32, i32, i32) {
    %c0_i32 = arith.constant 0 : i32
    %c0_i32_0 = arith.constant 0 : i32
    %c0_i32_1 = arith.constant 0 : i32
    return %arg0, %c0_i32, %c0_i32_0 : i32, i32, i32
  }
  func.func @transform_3(%arg0: i32, %arg1: i32) -> (i32, i32, i32) {
    %c0_i32 = arith.constant 0 : i32
    %c0_i32_0 = arith.constant 0 : i32
    %c0_i32_1 = arith.constant 0 : i32
    return %arg0, %c0_i32, %c0_i32_0 : i32, i32, i32
  }
  func.func @transform_4(%arg0: i32, %arg1: i32) -> (i32, i32, i32) {
    %c0_i32 = arith.constant 0 : i32
    %c0_i32_0 = arith.constant 0 : i32
    return %arg0, %arg1, %c0_i32 : i32, i32, i32
  }
}

</mosaic_0001>

<llo_original>
// kernel: tpu_custom_call.1
$region0: #{tpu_custom_call.1}
  #allocation0 [shape = 'u32[]', space=smem, size = 0x4, offset = 0x4, fixed_abs, tag = 'smem constant byte address 0x4 - core index']
  #allocation1 [shape = 'u32[144,128]{1,0:T(1,128)}', space=vmem, size = 0x12000, scoped, tag = 'internal scratch']
  %s0 = inlined_call_operand.vmem [shape: f32[2,8,32], index: 0, kind: input, shape index: {}]
  %s1 = inlined_call_operand.vmem [shape: f32[1,32], index: 1, kind: input, shape index: {}]
  %s2 = inlined_call_operand.vmem [shape: bf16[2,32,7], index: 2, kind: input, shape index: {}]
  %s3 = inlined_call_operand.vmem [shape: f32[2,1,7], index: 3, kind: input, shape index: {}]
  %s4 = inlined_call_operand.vmem [shape: f32[2,64,7], index: 4, kind: output, shape index: {}]
  %s5 = sld [smem:[#allocation0]]
  $region49: #{tpu_custom_call.1} parent=0
    _
  %s7 = ssub.s32 1, %s5
  %s8 = scalar_select 0, %s7, %s5
  loop: start=0, step=1, limit=4
  $region2: #{tpu_custom_call.1} parent=0 // loop_pre_header
    _
  $region3: #{tpu_custom_call.1} parent=0 // loop_header
    %s10 = sphi 0, %s14
    %p11 = scmp.ge.s32.totalorder %s10, 4
    %s17 = sphi 0, %s29
    %s18 = sphi 0, %s25
    %s19 = sphi 0, %s17
    %s20 = sphi 0, %s18
    %s21 = sphi 0, %s19
    %s22 = sphi 0, %s20
    %s32 = sphi 0, %s34
    %s35 = sphi 0, %s32
    %s36 = sphi 0, %s35
    %s52 = sphi 0, %s36
    %s56 = sphi 0, %s56
    %s58 = sphi 0, %s56
    %s59 = sphi 0, %s58
    %s73 = sphi 0, %s59
    %s79 = sphi 0, %s81
    %s82 = sphi 0, %s79
    %s83 = sphi 0, %s82
    %s99 = sphi 0, %s83
    %s105 = sphi 0, %s107
    %s108 = sphi 0, %s105
    %s109 = sphi 0, %s108
    %s125 = sphi 0, %s109
    %s133 = sphi 0, %s135
    %s136 = sphi 0, %s133
    %s137 = sphi 0, %s136
    %s153 = sphi 0, %s137
  $region4: #{tpu_custom_call.1} parent=0 // loop_header_branch
    %13 = sbr.rel (%p11) target = $region8
  $region5: #{tpu_custom_call.1} parent=0 // loop_body
    %s15 = ssub.s32 %s10, 1
    %s16 = ssub.s32 %s10, 2
    %s23 = sadd.s32 1, %s18
    %p24 = scmp.ge.s32.totalorder %s23, 1
    %s25 = scalar_select %p24, 0, %s23
    %s26 = sadd.s32 1, %s17
    %s27 = scalar_select %p24, %s26, %s17
    %p28 = scmp.ge.s32.totalorder %s27, 2
    %s29 = scalar_select %p28, 0, %s27
    %s30 = ssub.s32 %s17, %s29
    %p31 = scmp.eq.s32.totalorder %s30, 0
    %s33 = sadd.s32 %s32, 1
    %s34 = scalar_select %p31, %s32, %s33
    %p37 = pneg %p31
    %p38 = scmp.eq.s32.totalorder %s10, 1
    %p39 = por %p37, %p38
    %p40 = scmp.ne.s32.totalorder %s32, %s35
    %p41 = scmp.eq.s32.totalorder %s10, 0
    %p42 = por %p40, %p41
    %p43 = scmp.ne.s32.totalorder %s32, %s35
    %p44 = scmp.eq.s32.totalorder %s15, 1
    %p45 = por %p43, %p44
    %p46 = scmp.ne.s32.totalorder %s35, %s36
    %p47 = scmp.eq.s32.totalorder %s15, 0
    %p48 = por %p46, %p47
    %p49 = scmp.ne.s32.totalorder %s35, %s36
    %p50 = scmp.eq.s32.totalorder %s16, 1
    %p51 = por %p49, %p50
    %p53 = scmp.ne.s32.totalorder %s36, %s52
    %p54 = scmp.eq.s32.totalorder %s16, 0
    %p55 = por %p53, %p54
    %s57 = sadd.s32 %s56, 1
    %p60 = scmp.eq.s32.totalorder %s10, 1
    %p61 = scmp.ne.s32.totalorder %s56, %s58
    %p62 = scmp.eq.s32.totalorder %s10, 0
    %p63 = por %p61, %p62
    %p64 = scmp.ne.s32.totalorder %s56, %s58
    %p65 = scmp.eq.s32.totalorder %s15, 1
    %p66 = por %p64, %p65
    %p67 = scmp.ne.s32.totalorder %s58, %s59
    %p68 = scmp.eq.s32.totalorder %s15, 0
    %p69 = por %p67, %p68
    %p70 = scmp.ne.s32.totalorder %s58, %s59
    %p71 = scmp.eq.s32.totalorder %s16, 1
    %p72 = por %p70, %p71
    %p74 = scmp.ne.s32.totalorder %s59, %s73
    %p75 = scmp.eq.s32.totalorder %s16, 0
    %p76 = por %p74, %p75
    %s77 = ssub.s32 %s17, %s29
    %p78 = scmp.eq.s32.totalorder %s77, 0
    %s80 = sadd.s32 %s79, 1
    %s81 = scalar_select %p78, %s79, %s80
    %p84 = pneg %p78
    %p85 = scmp.eq.s32.totalorder %s10, 1
    %p86 = por %p84, %p85
    %p87 = scmp.ne.s32.totalorder %s79, %s82
    %p88 = scmp.eq.s32.totalorder %s10, 0
    %p89 = por %p87, %p88
    %p90 = scmp.ne.s32.totalorder %s79, %s82
    %p91 = scmp.eq.s32.totalorder %s15, 1
    %p92 = por %p90, %p91
    %p93 = scmp.ne.s32.totalorder %s82, %s83
    %p94 = scmp.eq.s32.totalorder %s15, 0
    %p95 = por %p93, %p94
    %p96 = scmp.ne.s32.totalorder %s82, %s83
    %p97 = scmp.eq.s32.totalorder %s16, 1
    %p98 = por %p96, %p97
    %p100 = scmp.ne.s32.totalorder %s83, %s99
    %p101 = scmp.eq.s32.totalorder %s16, 0
    %p102 = por %p100, %p101
    %s103 = ssub.s32 %s17, %s29
    %p104 = scmp.eq.s32.totalorder %s103, 0
    %s106 = sadd.s32 %s105, 1
    %s107 = scalar_select %p104, %s105, %s106
    %p110 = pneg %p104
    %p111 = scmp.eq.s32.totalorder %s10, 1
    %p112 = por %p110, %p111
    %p113 = scmp.ne.s32.totalorder %s105, %s108
    %p114 = scmp.eq.s32.totalorder %s10, 0
    %p115 = por %p113, %p114
    %p116 = scmp.ne.s32.totalorder %s105, %s108
    %p117 = scmp.eq.s32.totalorder %s15, 1
    %p118 = por %p116, %p117
    %p119 = scmp.ne.s32.totalorder %s108, %s109
    %p120 = scmp.eq.s32.totalorder %s15, 0
    %p121 = por %p119, %p120
    %p122 = scmp.ne.s32.totalorder %s108, %s109
    %p123 = scmp.eq.s32.totalorder %s16, 1
    %p124 = por %p122, %p123
    %p126 = scmp.ne.s32.totalorder %s109, %s125
    %p127 = scmp.eq.s32.totalorder %s16, 0
    %p128 = por %p126, %p127
    %s129 = ssub.s32 %s17, %s29
    %s130 = ssub.s32 %s18, %s25
    %s131 = sor.u32 %s129, %s130
    %p132 = scmp.eq.s32.totalorder %s131, 0
    %s134 = sadd.s32 %s133, 1
    %s135 = scalar_select %p132, %s133, %s134
    %p138 = pneg %p132
    %p139 = scmp.eq.s32.totalorder %s10, 1
    %p140 = por %p138, %p139
    %p141 = scmp.ne.s32.totalorder %s133, %s136
    %p142 = scmp.eq.s32.totalorder %s10, 0
    %p143 = por %p141, %p142
    %p144 = scmp.ne.s32.totalorder %s133, %s136
    %p145 = scmp.eq.s32.totalorder %s15, 1
    %p146 = por %p144, %p145
    %p147 = scmp.ne.s32.totalorder %s136, %s137
    %p148 = scmp.eq.s32.totalorder %s15, 0
    %p149 = por %p147, %p148
    %p150 = scmp.ne.s32.totalorder %s136, %s137
    %p151 = scmp.eq.s32.totalorder %s16, 1
    %p152 = por %p150, %p151
    %p154 = scmp.ne.s32.totalorder %s137, %s153
    %p155 = scmp.eq.s32.totalorder %s16, 0
    %p156 = por %p154, %p155
    %p157 = scmp.le.s32.totalorder 1, %s10
    %p158 = scmp.lt.s32.totalorder %s10, 3
    %p159 = pnand %p157, %p158
    %p160 = pneg %p159
    // Predicated region
    $region9: #{tpu_custom_call.1} parent=5 // pred_check
      _
    $region10: #{tpu_custom_call.1} parent=5 // pred_check_branch
      %162 = sbr.rel (%p159) target = $region12
    $region11: #{tpu_custom_call.1} parent=5 // pred_region
      %s163 = ssub.s32 %s10, 1
      // Predicated region
      $region13: #{tpu_custom_call.1} parent=11 // pred_check
        %p164 = pneg %p48
      $region14: #{tpu_custom_call.1} parent=11 // pred_check_branch
        %166 = sbr.rel (%p164) target = $region16
      $region15: #{tpu_custom_call.1} parent=11 // pred_region
        %p167 = scmp.lt.s32.totalorder %s19, 1
        %s168 = scalar_select %p167, %s19, 1
        %s169 = smul.addr %s168, 8
        %s170 = scalar_lea.vmem %s0, %s169
      $region16: #{tpu_custom_call.1} parent=11 // pred_fallthru
        _
      // Predicated region
      $region17: #{tpu_custom_call.1} parent=11 // pred_check
        %p171 = pneg %p69
      $region18: #{tpu_custom_call.1} parent=11 // pred_check_branch
        %173 = sbr.rel (%p171) target = $region20
      $region19: #{tpu_custom_call.1} parent=11 // pred_region
        _
      $region20: #{tpu_custom_call.1} parent=11 // pred_fallthru
        _
      // Predicated region
      $region21: #{tpu_custom_call.1} parent=11 // pred_check
        %p174 = pneg %p95
      $region22: #{tpu_custom_call.1} parent=11 // pred_check_branch
        %176 = sbr.rel (%p174) target = $region24
      $region23: #{tpu_custom_call.1} parent=11 // pred_region
        %p177 = scmp.lt.s32.totalorder %s19, 1
        %s178 = scalar_select %p177, %s19, 1
        %s179 = smul.addr %s178, 4
        %s180 = smul.addr %s179, 4
        %s181 = scalar_lea.vmem %s2, %s180
      $region24: #{tpu_custom_call.1} parent=11 // pred_fallthru
        _
      // Predicated region
      $region25: #{tpu_custom_call.1} parent=11 // pred_check
        %p182 = pneg %p121
      $region26: #{tpu_custom_call.1} parent=11 // pred_check_branch
        %184 = sbr.rel (%p182) target = $region28
      $region27: #{tpu_custom_call.1} parent=11 // pred_region
        %p185 = scmp.lt.s32.totalorder %s19, 1
        %s186 = scalar_select %p185, %s19, 1
        %s187 = scalar_lea.vmem %s3, %s186
      $region28: #{tpu_custom_call.1} parent=11 // pred_fallthru
        _
    $region12: #{tpu_custom_call.1} parent=5 // pred_fallthru
      _
    %p188 = scmp.lt.s32.totalorder %s10, 2
    // Predicated region
    $region29: #{tpu_custom_call.1} parent=5 // pred_check
      %p189 = pneg %p188
    $region30: #{tpu_custom_call.1} parent=5 // pred_check_branch
      %191 = sbr.rel (%p189) target = $region32
    $region31: #{tpu_custom_call.1} parent=5 // pred_region
      _
    $region32: #{tpu_custom_call.1} parent=5 // pred_fallthru
      _
    %p192 = scmp.le.s32.totalorder 1, %s10
    %p193 = scmp.lt.s32.totalorder %s10, 3
    %p194 = pnand %p192, %p193
    %p195 = pneg %p194
    // Predicated region
    $region33: #{tpu_custom_call.1} parent=5 // pred_check
      _
    $region34: #{tpu_custom_call.1} parent=5 // pred_check_branch
      %197 = sbr.rel (%p194) target = $region36
    $region35: #{tpu_custom_call.1} parent=5 // pred_region
      %s198 = ssub.s32 %s10, 1
      %p199 = scmp.lt.s32.totalorder %s19, 1
      %s200 = scalar_select %p199, %s19, 1
      %s201 = smul.addr %s200, 8
      %s202 = scalar_lea.vmem %s0, %s201
      %p203 = pneg %p48
      %p204 = pneg %p45
      %p205 = pneg %p69
      %p206 = pneg %p66
      %p207 = scmp.lt.s32.totalorder %s19, 1
      %s208 = scalar_select %p207, %s19, 1
      %s209 = smul.addr %s208, 4
      %s210 = smul.addr %s209, 4
      %s211 = scalar_lea.vmem %s2, %s210
      %p212 = pneg %p95
      %p213 = pneg %p92
      %p214 = scmp.lt.s32.totalorder %s19, 1
      %s215 = scalar_select %p214, %s19, 1
      %s216 = scalar_lea.vmem %s3, %s215
      %p217 = pneg %p121
      %p218 = pneg %p118
      %p219 = pneg %p149
      %p220 = pneg %p146
      %s221 = smul.u32 8, %s20
      %p222 = scmp.lt.s32.totalorder %s19, 1
      %s223 = scalar_select %p222, %s19, 1
      %p224 = scmp.lt.s32.totalorder %s221, 7
      %s225 = scalar_select %p224, %s221, 7
      %s226 = smul.addr %s223, 8
      %s227 = sadd.s32 %s225, %s226
      %s228 = smul.addr %s227, 8
      %s229 = scalar_lea.vmem %s4, %s228
      %p230 = scmp.lt.s32.totalorder %s19, 1
      %s231 = scalar_select %p230, %s19, 1
      %s232 = smul.addr %s231, 8
      %s233 = scalar_lea.vmem %s0, %s232
      %p234 = scmp.lt.s32.totalorder %s19, 1
      %s235 = scalar_select %p234, %s19, 1
      %s236 = smul.addr %s235, 4
      %s237 = smul.addr %s236, 4
      %s238 = scalar_lea.vmem %s2, %s237
      %p239 = scmp.lt.s32.totalorder %s19, 1
      %s240 = scalar_select %p239, %s19, 1
      %s241 = scalar_lea.vmem %s3, %s240
      %s242 = smul.u32 8, %s20
      %p243 = scmp.lt.s32.totalorder %s19, 1
      %s244 = scalar_select %p243, %s19, 1
      %p245 = scmp.lt.s32.totalorder %s242, 7
      %s246 = scalar_select %p245, %s242, 7
      %s247 = smul.addr %s244, 8
      %s248 = sadd.s32 %s246, %s247
      %s249 = smul.addr %s248, 8
      %s250 = scalar_lea.vmem %s4, %s249
      %s251 = smul.u32 8, %s20
      %v253 = vld [vmem:[%s233] sm:$0xff]
      %s254 = smul.u32 %s20, 8
      %s255 = scalar_lea.vmem %s233, %s254
      %v256 = vld [vmem:[%s255] sm:$0xff]
      %v257 = vld [vmem:[%s1] sm:$0x1]
      %v259 = vlaneseq
      %v260 = vshrl.u32 %v259, 7
      %v261 = vsub.s32 0, %v260
      %v262 = vrot.slane %v257, %v261
      %v264 = vadd.f32 %v253, %v262
      %v266 = vcombine.high %v256, %v256
      %v268 = vunpack.c.l.s4 1966171168
      %v269 = vunpack.c.0.s8 %v268
      %v270 = vlaneseq
      %v271 = vshrl.u32 %v270, 7
      %v272 = vsub.s32 %v269, %v271
      %v273 = vrot.slane %v256, %v272
      %v275 = vunpack.c.l.s4 1966171168
      %v276 = vunpack.c.0.s8 %v275
      %v277 = vlaneseq
      %v278 = vshrl.u32 %v277, 7
      %v279 = vsub.s32 %v276, %v278
      %v280 = vrot.slane %v266, %v279
      %v281 = vcombine.high %v273, %v273
      %v282 = vcombine.high %v280, %v280
      %v284 = vunpack.c.l.s4 1966171168
      %v285 = vunpack.c.0.s8 %v284
      %v286 = vlaneseq
      %v287 = vshrl.u32 %v286, 7
      %v288 = vsub.s32 %v285, %v287
      %v289 = vrot.slane %v273, %v288
      %v291 = vunpack.c.l.s4 1966171168
      %v292 = vunpack.c.0.s8 %v291
      %v293 = vlaneseq
      %v294 = vshrl.u32 %v293, 7
      %v295 = vsub.s32 %v292, %v294
      %v296 = vrot.slane %v280, %v295
      %v298 = vunpack.c.l.s4 1966171168
      %v299 = vunpack.c.0.s8 %v298
      %v300 = vlaneseq
      %v301 = vshrl.u32 %v300, 7
      %v302 = vsub.s32 %v299, %v301
      %v303 = vrot.slane %v281, %v302
      %v305 = vunpack.c.l.s4 1966171168
      %v306 = vunpack.c.0.s8 %v305
      %v307 = vlaneseq
      %v308 = vshrl.u32 %v307, 7
      %v309 = vsub.s32 %v306, %v308
      %v310 = vrot.slane %v282, %v309
      %v311 = vcombine.high %v289, %v289
      %v312 = vcombine.high %v296, %v296
      %v313 = vcombine.high %v303, %v303
      %v314 = vcombine.high %v310, %v310
      %v315 = vlaneseq
      %v316 = vshrl.u32 %v315, 7
      %v317 = vsub.s32 0, %v316
      %v318 = vrot.slane %v289, %v317
      %v319 = vlaneseq
      %v320 = vshrl.u32 %v319, 7
      %v321 = vsub.s32 0, %v320
      %v322 = vrot.slane %v303, %v321
      %v323 = vlaneseq
      %v324 = vshrl.u32 %v323, 7
      %v325 = vsub.s32 0, %v324
      %v326 = vrot.slane %v311, %v325
      %v327 = vlaneseq
      %v328 = vshrl.u32 %v327, 7
      %v329 = vsub.s32 0, %v328
      %v330 = vrot.slane %v313, %v329
      %v331 = vlaneseq
      %v332 = vshrl.u32 %v331, 7
      %v333 = vsub.s32 0, %v332
      %v334 = vrot.slane %v296, %v333
      %v335 = vlaneseq
      %v336 = vshrl.u32 %v335, 7
      %v337 = vsub.s32 0, %v336
      %v338 = vrot.slane %v310, %v337
      %v339 = vlaneseq
      %v340 = vshrl.u32 %v339, 7
      %v341 = vsub.s32 0, %v340
      %v342 = vrot.slane %v312, %v341
      %v343 = vlaneseq
      %v344 = vshrl.u32 %v343, 7
      %v345 = vsub.s32 0, %v344
      %v346 = vrot.slane %v314, %v345
      %v355 = vsub.f32 %v264, %v318
      %v356 = vsub.f32 %v264, %v322
      %v357 = vsub.f32 %v264, %v326
      %v358 = vsub.f32 %v264, %v330
      %v359 = vsub.f32 %v264, %v334
      %v360 = vsub.f32 %v264, %v338
      %v361 = vsub.f32 %v264, %v342
      %v362 = vsub.f32 %v264, %v346
      %v363 = vmul.f32 %v355, 0.1
      %v364 = vmul.f32 %v356, 0.1
      %v365 = vmul.f32 %v357, 0.1
      %v366 = vmul.f32 %v358, 0.1
      %v367 = vmul.f32 %v359, 0.1
      %v368 = vmul.f32 %v360, 0.1
      %v369 = vmul.f32 %v361, 0.1
      %v370 = vmul.f32 %v362, 0.1
      %v371 = vmax.f32 %v355, %v363
      %v372 = vmax.f32 %v356, %v364
      %v373 = vmax.f32 %v357, %v365
      %v374 = vmax.f32 %v358, %v366
      %v375 = vmax.f32 %v359, %v367
      %v376 = vmax.f32 %v360, %v368
      %v377 = vmax.f32 %v361, %v369
      %v378 = vmax.f32 %v362, %v370
      %v379 = vpack.c.bf16 %v371, %v371
      %v380 = vpack.c.bf16 %v372, %v372
      %v381 = vpack.c.bf16 %v373, %v373
      %v382 = vpack.c.bf16 %v374, %v374
      %v383 = vpack.c.bf16 %v375, %v375
      %v384 = vpack.c.bf16 %v376, %v376
      %v385 = vpack.c.bf16 %v377, %v377
      %v386 = vpack.c.bf16 %v378, %v378
      %v387 = vld [vmem:[%s238] sm:$0xf]
      %v388 = vld [vmem:[%s238 + $0x4] sm:$0xf]
      %v389 = vld [vmem:[%s238 + $0x8] sm:$0xf]
      %v390 = vld [vmem:[%s238 + $0xc] sm:$0xf]
      %v391 = vld [vmem:[%s241] sm:$0x1]
      %v393 = vlaneseq
      %v394 = vshrl.u32 %v393, 7
      %v395 = vsub.s32 0, %v394
      %v396 = vrot.slane %v391, %v395
      %v406 = vunpack.c.l.b16 %v379
      %v407 = vunpack.c.l.b16 %v380
      %v408 = vunpack.c.l.b16 %v381
      %v409 = vunpack.c.l.b16 %v382
      %v410 = vunpack.c.l.b16 %v383
      %v411 = vunpack.c.l.b16 %v384
      %v412 = vunpack.c.l.b16 %v385
      %v413 = vunpack.c.l.b16 %v386
      %v414 = vpack.c.b16 %v407, %v406
      %v415 = vpack.c.b16 %v409, %v408
      %v416 = vpack.c.b16 %v411, %v410
      %v417 = vpack.c.b16 %v413, %v412
      %v422 = vunpack.c.l.b16 %v387
      %v423 = vunpack.c.l.b16 %v388
      %v424 = vunpack.c.l.b16 %v389
      %v425 = vunpack.c.l.b16 %v390
      %v426 = vpack.c.b16 %v423, %v422
      %v427 = vpack.c.b16 %v425, %v424
      %vm430 = vcmask 261120
      %v432 = vsel %vm430, %v414, 0
      %v435 = vsel %vm430, %v415, 0
      %v438 = vsel %vm430, %v416, 0
      %v441 = vsel %vm430, %v417, 0
      %443 = vmatprep.subr.bf16.mxu0 0
      %444 = vmatpush1.bf16.msra.mxu0 0
      %445 = vmatprep.subr.bf16.mxu0 0
      %446 = vmatpush1.bf16.msra.mxu0 0
      %447 = vmatprep.subr.bf16.mxu0 0
      %448 = vmatpush1.bf16.msra.mxu0 0
      %449 = vmatprep.subr.bf16.mxu0 0
      %450 = vmatpush1.bf16.msra.mxu0 0
      %451 = vmatprep.subr.bf16.mxu0 0
      %452 = vmatpush1.bf16.msra.mxu0 0
      %453 = vmatprep.subr.bf16.mxu0 0
      %454 = vmatpush1.bf16.msra.mxu0 0
      %455 = vmatprep.subr.bf16.mxu0 0
      %456 = vmatpush1.bf16.msra.mxu0 %v427
      %457 = vmatprep.subr.bf16.mxu0 0
      %458 = vmatpush1.bf16.msra.mxu0 %v426
      %459 = vmatprep.subr.bf16.mxu0 0
      %460 = vmatpush2.bf16.msra.mxu0 0
      %461 = vmatprep.subr.bf16.mxu0 0
      %462 = vmatpush2.bf16.msra.mxu0 0
      %463 = vmatprep.subr.bf16.mxu0 0
      %464 = vmatpush2.bf16.msra.mxu0 0
      %465 = vmatprep.subr.bf16.mxu0 0
      %466 = vmatpush2.bf16.msra.mxu0 0
      %467 = vmatprep.subr.bf16.mxu0 0
      %468 = vmatpush2.bf16.msra.mxu0 0
      %469 = vmatprep.subr.bf16.mxu0 0
      %470 = vmatpush2.bf16.msra.mxu0 0
      %471 = vmatprep.subr.bf16.mxu0 0
      %472 = vmatpush2.bf16.msra.mxu0 0
      %473 = vmatprep.subr.bf16.mxu0 0
      %474 = vmatpush2.bf16.msra.mxu0 0
      %475 = vmatprep.mubr.bf16.mxu0 0
      %476 = vmatmul.mubr.bf16.gmra.mxu0 %v432
      %v477 = vpop.f32.mrf.mxu0
      %v478 = vadd.f32 %v396, %v477
      %v479 = vpop.f32.mrf.mxu0
      %v480 = vpop.f32.mrf.mxu0
      %v481 = vadd.f32 %v396, %v480
      %v482 = vpop.f32.mrf.mxu0
      %483 = vmatprep.mubr.bf16.mxu0 0
      %484 = vmatmul.mubr.bf16.gmra.mxu0 %v435
      %v485 = vpop.f32.mrf.mxu0
      %v486 = vadd.f32 %v396, %v485
      %v487 = vpop.f32.mrf.mxu0
      %v488 = vpop.f32.mrf.mxu0
      %v489 = vadd.f32 %v396, %v488
      %v490 = vpop.f32.mrf.mxu0
      %491 = vmatprep.mubr.bf16.mxu0 0
      %492 = vmatmul.mubr.bf16.gmra.mxu0 %v438
      %v493 = vpop.f32.mrf.mxu0
      %v494 = vadd.f32 %v396, %v493
      %v495 = vpop.f32.mrf.mxu0
      %v496 = vpop.f32.mrf.mxu0
      %v497 = vadd.f32 %v396, %v496
      %v498 = vpop.f32.mrf.mxu0
      %499 = vmatprep.mubr.bf16.mxu0 0
      %500 = vmatmul.mubr.bf16.gmra.mxu0 %v441
      %v501 = vpop.f32.mrf.mxu0
      %v502 = vadd.f32 %v396, %v501
      %v503 = vpop.f32.mrf.mxu0
      %v504 = vpop.f32.mrf.mxu0
      %v505 = vadd.f32 %v396, %v504
      %v506 = vpop.f32.mrf.mxu0
      %507 = vdwg.mxu0
      %vm508 = vcmask 56320
      %509 = vst.msk [vmem:[%s250] sm:$0xff] %vm508, %v478
      %510 = vst.msk [vmem:[%s250 + $0x8] sm:$0xff] %vm508, %v481
      %511 = vst.msk [vmem:[%s250 + $0x10] sm:$0xff] %vm508, %v486
      %512 = vst.msk [vmem:[%s250 + $0x18] sm:$0xff] %vm508, %v489
      %513 = vst.msk [vmem:[%s250 + $0x20] sm:$0xff] %vm508, %v494
      %514 = vst.msk [vmem:[%s250 + $0x28] sm:$0xff] %vm508, %v497
      %515 = vst.msk [vmem:[%s250 + $0x30] sm:$0xff] %vm508, %v502
      %516 = vst.msk [vmem:[%s250 + $0x38] sm:$0xff] %vm508, %v505
      %s517 = smul.u32 8, %s20
      %p518 = scmp.lt.s32.totalorder %s19, 1
      %s519 = scalar_select %p518, %s19, 1
      %p520 = scmp.lt.s32.totalorder %s517, 7
      %s521 = scalar_select %p520, %s517, 7
      %s522 = smul.addr %s519, 8
      %s523 = sadd.s32 %s521, %s522
      %s524 = smul.addr %s523, 8
      %s525 = scalar_lea.vmem %s4, %s524
      // Predicated region
      $region37: #{tpu_custom_call.1} parent=35 // pred_check
        %p526 = pneg %p146
      $region38: #{tpu_custom_call.1} parent=35 // pred_check_branch
        %528 = sbr.rel (%p526) target = $region40
      $region39: #{tpu_custom_call.1} parent=35 // pred_region
        %s529 = smul.u32 8, %s20
      $region40: #{tpu_custom_call.1} parent=35 // pred_fallthru
        _
    $region36: #{tpu_custom_call.1} parent=5 // pred_fallthru
      _
    %p530 = scmp.le.s32.totalorder 2, %s10
    // Predicated region
    $region41: #{tpu_custom_call.1} parent=5 // pred_check
      %p531 = pneg %p530
    $region42: #{tpu_custom_call.1} parent=5 // pred_check_branch
      %533 = sbr.rel (%p531) target = $region44
    $region43: #{tpu_custom_call.1} parent=5 // pred_region
      %s534 = ssub.s32 %s10, 2
      // Predicated region
      $region45: #{tpu_custom_call.1} parent=43 // pred_check
        %p535 = pneg %p152
      $region46: #{tpu_custom_call.1} parent=43 // pred_check_branch
        %537 = sbr.rel (%p535) target = $region48
      $region47: #{tpu_custom_call.1} parent=43 // pred_region
        %s538 = smul.u32 8, %s22
        %p539 = scmp.lt.s32.totalorder %s21, 1
        %s540 = scalar_select %p539, %s21, 1
        %p541 = scmp.lt.s32.totalorder %s538, 7
        %s542 = scalar_select %p541, %s538, 7
        %s543 = smul.addr %s540, 8
        %s544 = sadd.s32 %s542, %s543
        %s545 = smul.addr %s544, 8
        %s546 = scalar_lea.vmem %s4, %s545
      $region48: #{tpu_custom_call.1} parent=43 // pred_fallthru
        _
    $region44: #{tpu_custom_call.1} parent=5 // pred_fallthru
      _
  $region6: #{tpu_custom_call.1} parent=0 // loop_footer
    %s14 = sadd.s32 1, %s10
  $region7: #{tpu_custom_call.1} parent=0 // loop_footer_branch
    %9 = sbr.rel target = $region3
  $region8: #{tpu_custom_call.1} parent=0 // loop_exit
    _

// kernel: tpu_custom_call.1
$region0: #{tpu_custom_call.1}
  #allocation0 [shape = 'u32[]', space=smem, size = 0x4, offset = 0x4, fixed_abs, tag = 'smem constant byte address 0x4 - core index']
  #allocation1 [shape = 'u32[144,128]{1,0:T(1,128)}', space=vmem, size = 0x12000, scoped, tag = 'internal scratch']
  %s0 = inlined_call_operand.vmem [shape: f32[2,8,32], index: 0, kind: input, shape index: {}]
  %s1 = inlined_call_operand.vmem [shape: f32[1,32], index: 1, kind: input, shape index: {}]
  %s2 = inlined_call_operand.vmem [shape: bf16[2,32,7], index: 2, kind: input, shape index: {}]
  %s3 = inlined_call_operand.vmem [shape: f32[2,1,7], index: 3, kind: input, shape index: {}]
  %s4 = inlined_call_operand.vmem [shape: f32[2,64,7], index: 4, kind: output, shape index: {}]
  %s5 = sld [smem:[#allocation0]]
  $region49: #{tpu_custom_call.1} parent=0
    _
  %s7 = ssub.s32 1, %s5
  %s8 = scalar_select 0, %s7, %s5
  loop: start=0, step=1, limit=4
  $region2: #{tpu_custom_call.1} parent=0 // loop_pre_header
    _
  $region3: #{tpu_custom_call.1} parent=0 // loop_header
    %s10 = sphi 0, %s14
    %p11 = scmp.ge.s32.totalorder %s10, 4
    %s17 = sphi 0, %s29
    %s18 = sphi 0, %s25
    %s19 = sphi 0, %s17
    %s20 = sphi 0, %s18
    %s21 = sphi 0, %s19
    %s22 = sphi 0, %s20
    %s32 = sphi 0, %s34
    %s35 = sphi 0, %s32
    %s36 = sphi 0, %s35
    %s52 = sphi 0, %s36
    %s56 = sphi 0, %s56
    %s58 = sphi 0, %s56
    %s59 = sphi 0, %s58
    %s73 = sphi 0, %s59
    %s79 = sphi 0, %s81
    %s82 = sphi 0, %s79
    %s83 = sphi 0, %s82
    %s99 = sphi 0, %s83
    %s105 = sphi 0, %s107
    %s108 = sphi 0, %s105
    %s109 = sphi 0, %s108
    %s125 = sphi 0, %s109
    %s133 = sphi 0, %s135
    %s136 = sphi 0, %s133
    %s137 = sphi 0, %s136
    %s153 = sphi 0, %s137
  $region4: #{tpu_custom_call.1} parent=0 // loop_header_branch
    %13 = sbr.rel (%p11) target = $region8
  $region5: #{tpu_custom_call.1} parent=0 // loop_body
    %s15 = ssub.s32 %s10, 1
    %s16 = ssub.s32 %s10, 2
    %s23 = sadd.s32 1, %s18
    %p24 = scmp.ge.s32.totalorder %s23, 1
    %s25 = scalar_select %p24, 0, %s23
    %s26 = sadd.s32 1, %s17
    %s27 = scalar_select %p24, %s26, %s17
    %p28 = scmp.ge.s32.totalorder %s27, 2
    %s29 = scalar_select %p28, 0, %s27
    %s30 = ssub.s32 %s17, %s29
    %p31 = scmp.eq.s32.totalorder %s30, 0
    %s33 = sadd.s32 %s32, 1
    %s34 = scalar_select %p31, %s32, %s33
    %p37 = pneg %p31
    %p38 = scmp.eq.s32.totalorder %s10, 1
    %p39 = por %p37, %p38
    %p40 = scmp.ne.s32.totalorder %s32, %s35
    %p41 = scmp.eq.s32.totalorder %s10, 0
    %p42 = por %p40, %p41
    %p43 = scmp.ne.s32.totalorder %s32, %s35
    %p44 = scmp.eq.s32.totalorder %s15, 1
    %p45 = por %p43, %p44
    %p46 = scmp.ne.s32.totalorder %s35, %s36
    %p47 = scmp.eq.s32.totalorder %s15, 0
    %p48 = por %p46, %p47
    %p49 = scmp.ne.s32.totalorder %s35, %s36
    %p50 = scmp.eq.s32.totalorder %s16, 1
    %p51 = por %p49, %p50
    %p53 = scmp.ne.s32.totalorder %s36, %s52
    %p54 = scmp.eq.s32.totalorder %s16, 0
    %p55 = por %p53, %p54
    %s57 = sadd.s32 %s56, 1
    %p60 = scmp.eq.s32.totalorder %s10, 1
    %p61 = scmp.ne.s32.totalorder %s56, %s58
    %p62 = scmp.eq.s32.totalorder %s10, 0
    %p63 = por %p61, %p62
    %p64 = scmp.ne.s32.totalorder %s56, %s58
    %p65 = scmp.eq.s32.totalorder %s15, 1
    %p66 = por %p64, %p65
    %p67 = scmp.ne.s32.totalorder %s58, %s59
    %p68 = scmp.eq.s32.totalorder %s15, 0
    %p69 = por %p67, %p68
    %p70 = scmp.ne.s32.totalorder %s58, %s59
    %p71 = scmp.eq.s32.totalorder %s16, 1
    %p72 = por %p70, %p71
    %p74 = scmp.ne.s32.totalorder %s59, %s73
    %p75 = scmp.eq.s32.totalorder %s16, 0
    %p76 = por %p74, %p75
    %s77 = ssub.s32 %s17, %s29
    %p78 = scmp.eq.s32.totalorder %s77, 0
    %s80 = sadd.s32 %s79, 1
    %s81 = scalar_select %p78, %s79, %s80
    %p84 = pneg %p78
    %p85 = scmp.eq.s32.totalorder %s10, 1
    %p86 = por %p84, %p85
    %p87 = scmp.ne.s32.totalorder %s79, %s82
    %p88 = scmp.eq.s32.totalorder %s10, 0
    %p89 = por %p87, %p88
    %p90 = scmp.ne.s32.totalorder %s79, %s82
    %p91 = scmp.eq.s32.totalorder %s15, 1
    %p92 = por %p90, %p91
    %p93 = scmp.ne.s32.totalorder %s82, %s83
    %p94 = scmp.eq.s32.totalorder %s15, 0
    %p95 = por %p93, %p94
    %p96 = scmp.ne.s32.totalorder %s82, %s83
    %p97 = scmp.eq.s32.totalorder %s16, 1
    %p98 = por %p96, %p97
    %p100 = scmp.ne.s32.totalorder %s83, %s99
    %p101 = scmp.eq.s32.totalorder %s16, 0
    %p102 = por %p100, %p101
    %s103 = ssub.s32 %s17, %s29
    %p104 = scmp.eq.s32.totalorder %s103, 0
    %s106 = sadd.s32 %s105, 1
    %s107 = scalar_select %p104, %s105, %s106
    %p110 = pneg %p104
    %p111 = scmp.eq.s32.totalorder %s10, 1
    %p112 = por %p110, %p111
    %p113 = scmp.ne.s32.totalorder %s105, %s108
    %p114 = scmp.eq.s32.totalorder %s10, 0
    %p115 = por %p113, %p114
    %p116 = scmp.ne.s32.totalorder %s105, %s108
    %p117 = scmp.eq.s32.totalorder %s15, 1
    %p118 = por %p116, %p117
    %p119 = scmp.ne.s32.totalorder %s108, %s109
    %p120 = scmp.eq.s32.totalorder %s15, 0
    %p121 = por %p119, %p120
    %p122 = scmp.ne.s32.totalorder %s108, %s109
    %p123 = scmp.eq.s32.totalorder %s16, 1
    %p124 = por %p122, %p123
    %p126 = scmp.ne.s32.totalorder %s109, %s125
    %p127 = scmp.eq.s32.totalorder %s16, 0
    %p128 = por %p126, %p127
    %s129 = ssub.s32 %s17, %s29
    %s130 = ssub.s32 %s18, %s25
    %s131 = sor.u32 %s129, %s130
    %p132 = scmp.eq.s32.totalorder %s131, 0
    %s134 = sadd.s32 %s133, 1
    %s135 = scalar_select %p132, %s133, %s134
    %p138 = pneg %p132
    %p139 = scmp.eq.s32.totalorder %s10, 1
    %p140 = por %p138, %p139
    %p141 = scmp.ne.s32.totalorder %s133, %s136
    %p142 = scmp.eq.s32.totalorder %s10, 0
    %p143 = por %p141, %p142
    %p144 = scmp.ne.s32.totalorder %s133, %s136
    %p145 = scmp.eq.s32.totalorder %s15, 1
    %p146 = por %p144, %p145
    %p147 = scmp.ne.s32.totalorder %s136, %s137
    %p148 = scmp.eq.s32.totalorder %s15, 0
    %p149 = por %p147, %p148
    %p150 = scmp.ne.s32.totalorder %s136, %s137
    %p151 = scmp.eq.s32.totalorder %s16, 1
    %p152 = por %p150, %p151
    %p154 = scmp.ne.s32.totalorder %s137, %s153
    %p155 = scmp.eq.s32.totalorder %s16, 0
    %p156 = por %p154, %p155
    %p157 = scmp.le.s32.totalorder 1, %s10
    %p158 = scmp.lt.s32.totalorder %s10, 3
    %p159 = pnand %p157, %p158
    %p160 = pneg %p159
    // Predicated region
    $region9: #{tpu_custom_call.1} parent=5 // pred_check
      _
    $region10: #{tpu_custom_call.1} parent=5 // pred_check_branch
      %162 = sbr.rel (%p159) target = $region12
    $region11: #{tpu_custom_call.1} parent=5 // pred_region
      %s163 = ssub.s32 %s10, 1
      // Predicated region
      $region13: #{tpu_custom_call.1} parent=11 // pred_check
        %p164 = pneg %p69
      $region14: #{tpu_custom_call.1} parent=11 // pred_check_branch
        %166 = sbr.rel (%p164) target = $region16
      $region15: #{tpu_custom_call.1} parent=11 // pred_region
        _
      $region16: #{tpu_custom_call.1} parent=11 // pred_fallthru
        _
    $region12: #{tpu_custom_call.1} parent=5 // pred_fallthru
      _
    %p167 = scmp.lt.s32.totalorder %s10, 2
    // Predicated region
    $region17: #{tpu_custom_call.1} parent=5 // pred_check
      %p168 = pneg %p167
    $region18: #{tpu_custom_call.1} parent=5 // pred_check_branch
      %170 = sbr.rel (%p168) target = $region20
    $region19: #{tpu_custom_call.1} parent=5 // pred_region
      // Predicated region
      $region21: #{tpu_custom_call.1} parent=19 // pred_check
        %p171 = pneg %p42
      $region22: #{tpu_custom_call.1} parent=19 // pred_check_branch
        %173 = sbr.rel (%p171) target = $region24
      $region23: #{tpu_custom_call.1} parent=19 // pred_region
        %p174 = scmp.lt.s32.totalorder %s17, 1
        %s175 = scalar_select %p174, %s17, 1
        %s176 = smul.addr %s175, 8
        %s177 = scalar_lea.vmem %s0, %s176
      $region24: #{tpu_custom_call.1} parent=19 // pred_fallthru
        _
      // Predicated region
      $region25: #{tpu_custom_call.1} parent=19 // pred_check
        %p178 = pneg %p89
      $region26: #{tpu_custom_call.1} parent=19 // pred_check_branch
        %180 = sbr.rel (%p178) target = $region28
      $region27: #{tpu_custom_call.1} parent=19 // pred_region
        %p181 = scmp.lt.s32.totalorder %s17, 1
        %s182 = scalar_select %p181, %s17, 1
        %s183 = smul.addr %s182, 4
        %s184 = smul.addr %s183, 4
        %s185 = scalar_lea.vmem %s2, %s184
      $region28: #{tpu_custom_call.1} parent=19 // pred_fallthru
        _
      // Predicated region
      $region29: #{tpu_custom_call.1} parent=19 // pred_check
        %p186 = pneg %p115
      $region30: #{tpu_custom_call.1} parent=19 // pred_check_branch
        %188 = sbr.rel (%p186) target = $region32
      $region31: #{tpu_custom_call.1} parent=19 // pred_region
        %p189 = scmp.lt.s32.totalorder %s17, 1
        %s190 = scalar_select %p189, %s17, 1
        %s191 = scalar_lea.vmem %s3, %s190
      $region32: #{tpu_custom_call.1} parent=19 // pred_fallthru
        _
    $region20: #{tpu_custom_call.1} parent=5 // pred_fallthru
      _
    %p192 = scmp.le.s32.totalorder 1, %s10
    %p193 = scmp.lt.s32.totalorder %s10, 3
    %p194 = pnand %p192, %p193
    %p195 = pneg %p194
    // Predicated region
    $region33: #{tpu_custom_call.1} parent=5 // pred_check
      _
    $region34: #{tpu_custom_call.1} parent=5 // pred_check_branch
      %197 = sbr.rel (%p194) target = $region36
    $region35: #{tpu_custom_call.1} parent=5 // pred_region
      %s198 = ssub.s32 %s10, 1
      %p199 = scmp.lt.s32.totalorder %s19, 1
      %s200 = scalar_select %p199, %s19, 1
      %s201 = smul.addr %s200, 8
      %s202 = scalar_lea.vmem %s0, %s201
      %p203 = pneg %p48
      %p204 = pneg %p45
      %p205 = pneg %p69
      %p206 = pneg %p66
      %p207 = scmp.lt.s32.totalorder %s19, 1
      %s208 = scalar_select %p207, %s19, 1
      %s209 = smul.addr %s208, 4
      %s210 = smul.addr %s209, 4
      %s211 = scalar_lea.vmem %s2, %s210
      %p212 = pneg %p95
      %p213 = pneg %p92
      %p214 = scmp.lt.s32.totalorder %s19, 1
      %s215 = scalar_select %p214, %s19, 1
      %s216 = scalar_lea.vmem %s3, %s215
      %p217 = pneg %p121
      %p218 = pneg %p118
      %p219 = pneg %p149
      %p220 = pneg %p146
      %s221 = smul.u32 8, %s20
      %p222 = scmp.lt.s32.totalorder %s19, 1
      %s223 = scalar_select %p222, %s19, 1
      %p224 = scmp.lt.s32.totalorder %s221, 7
      %s225 = scalar_select %p224, %s221, 7
      %s226 = smul.addr %s223, 8
      %s227 = sadd.s32 %s225, %s226
      %s228 = smul.addr %s227, 8
      %s229 = scalar_lea.vmem %s4, %s228
      %p230 = scmp.lt.s32.totalorder %s19, 1
      %s231 = scalar_select %p230, %s19, 1
      %s232 = smul.addr %s231, 8
      %s233 = scalar_lea.vmem %s0, %s232
      %p234 = scmp.lt.s32.totalorder %s19, 1
      %s235 = scalar_select %p234, %s19, 1
      %s236 = smul.addr %s235, 4
      %s237 = smul.addr %s236, 4
      %s238 = scalar_lea.vmem %s2, %s237
      %p239 = scmp.lt.s32.totalorder %s19, 1
      %s240 = scalar_select %p239, %s19, 1
      %s241 = scalar_lea.vmem %s3, %s240
      %s242 = smul.u32 8, %s20
      %p243 = scmp.lt.s32.totalorder %s19, 1
      %s244 = scalar_select %p243, %s19, 1
      %p245 = scmp.lt.s32.totalorder %s242, 7
      %s246 = scalar_select %p245, %s242, 7
      %s247 = smul.addr %s244, 8
      %s248 = sadd.s32 %s246, %s247
      %s249 = smul.addr %s248, 8
      %s250 = scalar_lea.vmem %s4, %s249
      %s251 = smul.u32 8, %s20
      %v253 = vld [vmem:[%s233] sm:$0xff]
      %s254 = smul.u32 %s20, 8
      %s255 = scalar_lea.vmem %s233, %s254
      %v256 = vld [vmem:[%s255] sm:$0xff]
      %v257 = vld [vmem:[%s1] sm:$0x1]
      %v259 = vlaneseq
      %v260 = vshrl.u32 %v259, 7
      %v261 = vsub.s32 0, %v260
      %v262 = vrot.slane %v257, %v261
      %v264 = vadd.f32 %v253, %v262
      %v266 = vcombine.high %v256, %v256
      %v268 = vunpack.c.l.s4 1966171168
      %v269 = vunpack.c.0.s8 %v268
      %v270 = vlaneseq
      %v271 = vshrl.u32 %v270, 7
      %v272 = vsub.s32 %v269, %v271
      %v273 = vrot.slane %v256, %v272
      %v275 = vunpack.c.l.s4 1966171168
      %v276 = vunpack.c.0.s8 %v275
      %v277 = vlaneseq
      %v278 = vshrl.u32 %v277, 7
      %v279 = vsub.s32 %v276, %v278
      %v280 = vrot.slane %v266, %v279
      %v281 = vcombine.high %v273, %v273
      %v282 = vcombine.high %v280, %v280
      %v284 = vunpack.c.l.s4 1966171168
      %v285 = vunpack.c.0.s8 %v284
      %v286 = vlaneseq
      %v287 = vshrl.u32 %v286, 7
      %v288 = vsub.s32 %v285, %v287
      %v289 = vrot.slane %v273, %v288
      %v291 = vunpack.c.l.s4 1966171168
      %v292 = vunpack.c.0.s8 %v291
      %v293 = vlaneseq
      %v294 = vshrl.u32 %v293, 7
      %v295 = vsub.s32 %v292, %v294
      %v296 = vrot.slane %v280, %v295
      %v298 = vunpack.c.l.s4 1966171168
      %v299 = vunpack.c.0.s8 %v298
      %v300 = vlaneseq
      %v301 = vshrl.u32 %v300, 7
      %v302 = vsub.s32 %v299, %v301
      %v303 = vrot.slane %v281, %v302
      %v305 = vunpack.c.l.s4 1966171168
      %v306 = vunpack.c.0.s8 %v305
      %v307 = vlaneseq
      %v308 = vshrl.u32 %v307, 7
      %v309 = vsub.s32 %v306, %v308
      %v310 = vrot.slane %v282, %v309
      %v311 = vcombine.high %v289, %v289
      %v312 = vcombine.high %v296, %v296
      %v313 = vcombine.high %v303, %v303
      %v314 = vcombine.high %v310, %v310
      %v315 = vlaneseq
      %v316 = vshrl.u32 %v315, 7
      %v317 = vsub.s32 0, %v316
      %v318 = vrot.slane %v289, %v317
      %v319 = vlaneseq
      %v320 = vshrl.u32 %v319, 7
      %v321 = vsub.s32 0, %v320
      %v322 = vrot.slane %v303, %v321
      %v323 = vlaneseq
      %v324 = vshrl.u32 %v323, 7
      %v325 = vsub.s32 0, %v324
      %v326 = vrot.slane %v311, %v325
      %v327 = vlaneseq
      %v328 = vshrl.u32 %v327, 7
      %v329 = vsub.s32 0, %v328
      %v330 = vrot.slane %v313, %v329
      %v331 = vlaneseq
      %v332 = vshrl.u32 %v331, 7
      %v333 = vsub.s32 0, %v332
      %v334 = vrot.slane %v296, %v333
      %v335 = vlaneseq
      %v336 = vshrl.u32 %v335, 7
      %v337 = vsub.s32 0, %v336
      %v338 = vrot.slane %v310, %v337
      %v339 = vlaneseq
      %v340 = vshrl.u32 %v339, 7
      %v341 = vsub.s32 0, %v340
      %v342 = vrot.slane %v312, %v341
      %v343 = vlaneseq
      %v344 = vshrl.u32 %v343, 7
      %v345 = vsub.s32 0, %v344
      %v346 = vrot.slane %v314, %v345
      %v355 = vsub.f32 %v264, %v318
      %v356 = vsub.f32 %v264, %v322
      %v357 = vsub.f32 %v264, %v326
      %v358 = vsub.f32 %v264, %v330
      %v359 = vsub.f32 %v264, %v334
      %v360 = vsub.f32 %v264, %v338
      %v361 = vsub.f32 %v264, %v342
      %v362 = vsub.f32 %v264, %v346
      %v363 = vmul.f32 %v355, 0.1
      %v364 = vmul.f32 %v356, 0.1
      %v365 = vmul.f32 %v357, 0.1
      %v366 = vmul.f32 %v358, 0.1
      %v367 = vmul.f32 %v359, 0.1
      %v368 = vmul.f32 %v360, 0.1
      %v369 = vmul.f32 %v361, 0.1
      %v370 = vmul.f32 %v362, 0.1
      %v371 = vmax.f32 %v355, %v363
      %v372 = vmax.f32 %v356, %v364
      %v373 = vmax.f32 %v357, %v365
      %v374 = vmax.f32 %v358, %v366
      %v375 = vmax.f32 %v359, %v367
      %v376 = vmax.f32 %v360, %v368
      %v377 = vmax.f32 %v361, %v369
      %v378 = vmax.f32 %v362, %v370
      %v379 = vpack.c.bf16 %v371, %v371
      %v380 = vpack.c.bf16 %v372, %v372
      %v381 = vpack.c.bf16 %v373, %v373
      %v382 = vpack.c.bf16 %v374, %v374
      %v383 = vpack.c.bf16 %v375, %v375
      %v384 = vpack.c.bf16 %v376, %v376
      %v385 = vpack.c.bf16 %v377, %v377
      %v386 = vpack.c.bf16 %v378, %v378
      %v387 = vld [vmem:[%s238] sm:$0xf]
      %v388 = vld [vmem:[%s238 + $0x4] sm:$0xf]
      %v389 = vld [vmem:[%s238 + $0x8] sm:$0xf]
      %v390 = vld [vmem:[%s238 + $0xc] sm:$0xf]
      %v391 = vld [vmem:[%s241] sm:$0x1]
      %v393 = vlaneseq
      %v394 = vshrl.u32 %v393, 7
      %v395 = vsub.s32 0, %v394
      %v396 = vrot.slane %v391, %v395
      %v406 = vunpack.c.l.b16 %v379
      %v407 = vunpack.c.l.b16 %v380
      %v408 = vunpack.c.l.b16 %v381
      %v409 = vunpack.c.l.b16 %v382
      %v410 = vunpack.c.l.b16 %v383
      %v411 = vunpack.c.l.b16 %v384
      %v412 = vunpack.c.l.b16 %v385
      %v413 = vunpack.c.l.b16 %v386
      %v414 = vpack.c.b16 %v407, %v406
      %v415 = vpack.c.b16 %v409, %v408
      %v416 = vpack.c.b16 %v411, %v410
      %v417 = vpack.c.b16 %v413, %v412
      %v422 = vunpack.c.l.b16 %v387
      %v423 = vunpack.c.l.b16 %v388
      %v424 = vunpack.c.l.b16 %v389
      %v425 = vunpack.c.l.b16 %v390
      %v426 = vpack.c.b16 %v423, %v422
      %v427 = vpack.c.b16 %v425, %v424
      %vm430 = vcmask 261120
      %v432 = vsel %vm430, %v414, 0
      %v435 = vsel %vm430, %v415, 0
      %v438 = vsel %vm430, %v416, 0
      %v441 = vsel %vm430, %v417, 0
      %443 = vmatprep.subr.bf16.mxu0 0
      %444 = vmatpush1.bf16.msra.mxu0 0
      %445 = vmatprep.subr.bf16.mxu0 0
      %446 = vmatpush1.bf16.msra.mxu0 0
      %447 = vmatprep.subr.bf16.mxu0 0
      %448 = vmatpush1.bf16.msra.mxu0 0
      %449 = vmatprep.subr.bf16.mxu0 0
      %450 = vmatpush1.bf16.msra.mxu0 0
      %451 = vmatprep.subr.bf16.mxu0 0
      %452 = vmatpush1.bf16.msra.mxu0 0
      %453 = vmatprep.subr.bf16.mxu0 0
      %454 = vmatpush1.bf16.msra.mxu0 0
      %455 = vmatprep.subr.bf16.mxu0 0
      %456 = vmatpush1.bf16.msra.mxu0 %v427
      %457 = vmatprep.subr.bf16.mxu0 0
      %458 = vmatpush1.bf16.msra.mxu0 %v426
      %459 = vmatprep.subr.bf16.mxu0 0
      %460 = vmatpush2.bf16.msra.mxu0 0
      %461 = vmatprep.subr.bf16.mxu0 0
      %462 = vmatpush2.bf16.msra.mxu0 0
      %463 = vmatprep.subr.bf16.mxu0 0
      %464 = vmatpush2.bf16.msra.mxu0 0
      %465 = vmatprep.subr.bf16.mxu0 0
      %466 = vmatpush2.bf16.msra.mxu0 0
      %467 = vmatprep.subr.bf16.mxu0 0
      %468 = vmatpush2.bf16.msra.mxu0 0
      %469 = vmatprep.subr.bf16.mxu0 0
      %470 = vmatpush2.bf16.msra.mxu0 0
      %471 = vmatprep.subr.bf16.mxu0 0
      %472 = vmatpush2.bf16.msra.mxu0 0
      %473 = vmatprep.subr.bf16.mxu0 0
      %474 = vmatpush2.bf16.msra.mxu0 0
      %475 = vmatprep.mubr.bf16.mxu0 0
      %476 = vmatmul.mubr.bf16.gmra.mxu0 %v432
      %v477 = vpop.f32.mrf.mxu0
      %v478 = vadd.f32 %v396, %v477
      %v479 = vpop.f32.mrf.mxu0
      %v480 = vpop.f32.mrf.mxu0
      %v481 = vadd.f32 %v396, %v480
      %v482 = vpop.f32.mrf.mxu0
      %483 = vmatprep.mubr.bf16.mxu0 0
      %484 = vmatmul.mubr.bf16.gmra.mxu0 %v435
      %v485 = vpop.f32.mrf.mxu0
      %v486 = vadd.f32 %v396, %v485
      %v487 = vpop.f32.mrf.mxu0
      %v488 = vpop.f32.mrf.mxu0
      %v489 = vadd.f32 %v396, %v488
      %v490 = vpop.f32.mrf.mxu0
      %491 = vmatprep.mubr.bf16.mxu0 0
      %492 = vmatmul.mubr.bf16.gmra.mxu0 %v438
      %v493 = vpop.f32.mrf.mxu0
      %v494 = vadd.f32 %v396, %v493
      %v495 = vpop.f32.mrf.mxu0
      %v496 = vpop.f32.mrf.mxu0
      %v497 = vadd.f32 %v396, %v496
      %v498 = vpop.f32.mrf.mxu0
      %499 = vmatprep.mubr.bf16.mxu0 0
      %500 = vmatmul.mubr.bf16.gmra.mxu0 %v441
      %v501 = vpop.f32.mrf.mxu0
      %v502 = vadd.f32 %v396, %v501
      %v503 = vpop.f32.mrf.mxu0
      %v504 = vpop.f32.mrf.mxu0
      %v505 = vadd.f32 %v396, %v504
      %v506 = vpop.f32.mrf.mxu0
      %507 = vdwg.mxu0
      %vm508 = vcmask 56320
      %509 = vst.msk [vmem:[%s250] sm:$0xff] %vm508, %v478
      %510 = vst.msk [vmem:[%s250 + $0x8] sm:$0xff] %vm508, %v481
      %511 = vst.msk [vmem:[%s250 + $0x10] sm:$0xff] %vm508, %v486
      %512 = vst.msk [vmem:[%s250 + $0x18] sm:$0xff] %vm508, %v489
      %513 = vst.msk [vmem:[%s250 + $0x20] sm:$0xff] %vm508, %v494
      %514 = vst.msk [vmem:[%s250 + $0x28] sm:$0xff] %vm508, %v497
      %515 = vst.msk [vmem:[%s250 + $0x30] sm:$0xff] %vm508, %v502
      %516 = vst.msk [vmem:[%s250 + $0x38] sm:$0xff] %vm508, %v505
      %s517 = smul.u32 8, %s20
      %p518 = scmp.lt.s32.totalorder %s19, 1
      %s519 = scalar_select %p518, %s19, 1
      %p520 = scmp.lt.s32.totalorder %s517, 7
      %s521 = scalar_select %p520, %s517, 7
      %s522 = smul.addr %s519, 8
      %s523 = sadd.s32 %s521, %s522
      %s524 = smul.addr %s523, 8
      %s525 = scalar_lea.vmem %s4, %s524
      // Predicated region
      $region37: #{tpu_custom_call.1} parent=35 // pred_check
        %p526 = pneg %p146
      $region38: #{tpu_custom_call.1} parent=35 // pred_check_branch
        %528 = sbr.rel (%p526) target = $region40
      $region39: #{tpu_custom_call.1} parent=35 // pred_region
        %s529 = smul.u32 8, %s20
      $region40: #{tpu_custom_call.1} parent=35 // pred_fallthru
        _
    $region36: #{tpu_custom_call.1} parent=5 // pred_fallthru
      _
    %p530 = scmp.le.s32.totalorder 2, %s10
    // Predicated region
    $region41: #{tpu_custom_call.1} parent=5 // pred_check
      %p531 = pneg %p530
    $region42: #{tpu_custom_call.1} parent=5 // pred_check_branch
      %533 = sbr.rel (%p531) target = $region44
    $region43: #{tpu_custom_call.1} parent=5 // pred_region
      %s534 = ssub.s32 %s10, 2
      // Predicated region
      $region45: #{tpu_custom_call.1} parent=43 // pred_check
        %p535 = pneg %p152
      $region46: #{tpu_custom_call.1} parent=43 // pred_check_branch
        %537 = sbr.rel (%p535) target = $region48
      $region47: #{tpu_custom_call.1} parent=43 // pred_region
        %s538 = smul.u32 8, %s22
        %p539 = scmp.lt.s32.totalorder %s21, 1
        %s540 = scalar_select %p539, %s21, 1
        %p541 = scmp.lt.s32.totalorder %s538, 7
        %s542 = scalar_select %p541, %s538, 7
        %s543 = smul.addr %s540, 8
        %s544 = sadd.s32 %s542, %s543
        %s545 = smul.addr %s544, 8
        %s546 = scalar_lea.vmem %s4, %s545
      $region48: #{tpu_custom_call.1} parent=43 // pred_fallthru
        _
    $region44: #{tpu_custom_call.1} parent=5 // pred_fallthru
      _
  $region6: #{tpu_custom_call.1} parent=0 // loop_footer
    %s14 = sadd.s32 1, %s10
  $region7: #{tpu_custom_call.1} parent=0 // loop_footer_branch
    %9 = sbr.rel target = $region3
  $region8: #{tpu_custom_call.1} parent=0 // loop_exit
    _

</llo_original>
